<compile_context>
chip_gen: v6e
topology: v6e:2x2x1
jax: 0.10.0
libtpu: 0.0.40
codegen_flags: <defaults>
</compile_context>

<pallas_src>
import jax
import jax.numpy as jnp
from jax.experimental import pallas as pl
from jax.experimental.pallas import tpu as pltpu


class Downscaler:
    """Faithful mirror of the (empty) PyTorch module."""

    def __init__(self):
        pass

    def forward(self):
        # Exactly matches the reference: no inputs, returns None.
        return None


# ----------------------------- Pallas kernel ------------------------------- #

def _downscale2x_kernel(x_ref, pwt_ref, o_ref):
    # x_ref  : (2*rblk, W)   input rows; row pairs (2r, 2r+1) are adjacent
    # pwt_ref: (W, W//2)     column-pair averaging matrix (entries 0.25)
    # o_ref  : (rblk, W//2)
    rblk = o_ref.shape[0]
    # Row-pair sum on the VPU via strided sublane loads (no O(H^2) operand, no MXU).
    even = x_ref[pl.ds(0, rblk, stride=2), :].astype(jnp.float32)
    odd = x_ref[pl.ds(1, rblk, stride=2), :].astype(jnp.float32)
    t = even + odd                                                     # (rblk, W)
    # Column-pair mean via a tiny matmul; the 0.25 scale is folded into pwt.
    y = jnp.dot(t, pwt_ref[...], preferred_element_type=jnp.float32)   # (rblk, W//2)
    # TODO(synk): integer inputs would truncate here; round-to-nearest not implemented.
    o_ref[...] = y.astype(o_ref.dtype)


def _pick_row_block(total_out_rows, width, itemsize, max_row_block=None,
                    target_bytes=4 << 20):
    """Output rows per grid step (input tile is (2*rblk, width))."""
    R = total_out_rows
    if R <= 8 or R % 8 != 0:
        # Degenerate shapes: one full block (block dim == full array dim is legal).
        return R
    rblk = target_bytes // max(1, 2 * width * itemsize)
    if max_row_block is not None:
        rblk = min(rblk, max_row_block)
    rblk = min(rblk, R)
    rblk = max(8, (rblk // 8) * 8)           # multiple of 8 sublanes
    while R % rblk:                          # make it divide evenly (8 always works)
        rblk -= 8
    return rblk


def downscale2x(x, *, max_row_block=None):
    """2x2 average-pool downscale of an NCHW tensor via a Pallas TPU kernel."""
    B, C, H, W = x.shape
    assert H % 2 == 0 and W % 2 == 0
    N = B * C * H            # total input rows after flattening (b, c, h)
    R = N // 2               # total output rows
    Wo = W // 2

    x_flat = x.reshape(N, W)                 # contiguous reshape: free

    # Column-pair averaging matrix, (W, W//2), entries 0.25 (mean scale folded in).
    # Built directly from iotas -- no O(W^2) jnp.eye materialization.
    pwt = jnp.where(
        (jnp.arange(W)[:, None] // 2) == jnp.arange(Wo)[None, :],
        jnp.float32(0.25), jnp.float32(0.0))

    itemsize = jnp.dtype(x.dtype).itemsize
    rblk = _pick_row_block(R, W, itemsize, max_row_block=max_row_block)
    grid = (R // rblk,)

    out_elems = R * Wo
    cost = pl.CostEstimate(
        flops=3 * out_elems,                 # 3 adds per pooled output (mem-bound op)
        transcendentals=0,
        bytes_accessed=(N * W + R * Wo) * itemsize + W * Wo * 4,
    )

    out_flat = pl.pallas_call(
        _downscale2x_kernel,
        out_shape=jax.ShapeDtypeStruct((R, Wo), x.dtype),
        grid_spec=pltpu.PrefetchScalarGridSpec(
            num_scalar_prefetch=0,
            grid=grid,
            in_specs=[
                pl.BlockSpec((2 * rblk, W), lambda i: (i, 0)),
                pl.BlockSpec((W, Wo), lambda i: (0, 0)),
            ],
            out_specs=pl.BlockSpec((rblk, Wo), lambda i: (i, 0)),
        ),
        compiler_params=pltpu.CompilerParams(
            dimension_semantics=("parallel",),   # single flat axis -> even megacore split
            vmem_limit_bytes=48 * 1024 * 1024,   # within v7x's 64 MiB physical VMEM
        ),
        cost_estimate=cost,
    )(x_flat, pwt)

    # TODO(synk): for W//2 < 128 the output store is lane-masked (vst.msk); packing
    #             channels along lanes would require a wrapper transpose (extra HBM
    #             pass), so it is left as-is -- real image widths (W >= 256) are
    #             already lane-dense.
    return out_flat.reshape(B, C, H // 2, Wo)


if __name__ == "__main__":
    # Faithful no-op forward of the reference module.
    module = Downscaler()
    assert module.forward() is None

    key = jax.random.PRNGKey(0)

    # Small deterministic NCHW example (single grid step).
    x = jax.random.normal(key, (2, 4, 16, 16), dtype=jnp.float32)
    y = jax.block_until_ready(downscale2x(x))
    ref = x.reshape(2, 4, 8, 2, 8, 2).mean(axis=(3, 5))
    assert y.shape == (2, 4, 8, 8)
    assert jnp.allclose(y, ref, atol=1e-5, rtol=1e-5)

    # Slightly larger example forcing a multi-step grid (8 steps) to exercise tiling.
    x2 = jax.random.normal(jax.random.PRNGKey(0), (2, 4, 32, 16), dtype=jnp.float32)
    y2 = jax.block_until_ready(downscale2x(x2, max_row_block=16))
    ref2 = x2.reshape(2, 4, 16, 2, 8, 2).mean(axis=(3, 5))
    assert y2.shape == (2, 4, 16, 8)
    assert jnp.allclose(y2, ref2, atol=1e-5, rtol=1e-5)

    print("KERNEL_OK")
</pallas_src>

<mosaic_0001>
module attributes {stable_mosaic.version = 11 : i64} {
  func.func @_downscale2x_kernel(%arg0: i32, %arg1: memref<128x16xf32, #tpu.memory_space<vmem>>, %arg2: memref<16x8xf32, #tpu.memory_space<vmem>>, %arg3: memref<64x8xf32, #tpu.memory_space<vmem>>) attributes {dimension_semantics = [#tpu.dimension_semantics<parallel>], iteration_bounds = array<i64: 1>, scalar_prefetch = 0 : i64, scratch_operands = 0 : i64, tpu.core_type = #tpu.core_type<tc>, window_params = [{transform_indices = @transform_0, window_bounds = array<i64: 128, 16>}, {pipeline_mode = #tpu.pipeline_mode<synchronous>, transform_indices = @transform_1, window_bounds = array<i64: 16, 8>}, {transform_indices = @transform_2, window_bounds = array<i64: 64, 8>}]} {
    %c0 = arith.constant 0 : index
    %c0_0 = arith.constant 0 : index
    %0 = tpu.strided_load %arg1[%c0, %c0_0] {strides = array<i32: 2, 1>} : memref<128x16xf32, #tpu.memory_space<vmem>>, vector<64x16xf32>
    %c1 = arith.constant 1 : index
    %c0_1 = arith.constant 0 : index
    %1 = tpu.strided_load %arg1[%c1, %c0_1] {strides = array<i32: 2, 1>} : memref<128x16xf32, #tpu.memory_space<vmem>>, vector<64x16xf32>
    %2 = arith.addf %0, %1 : vector<64x16xf32>
    %c0_2 = arith.constant 0 : index
    %c0_3 = arith.constant 0 : index
    %3 = vector.load %arg2[%c0_2, %c0_3] : memref<16x8xf32, #tpu.memory_space<vmem>>, vector<16x8xf32>
    %cst = arith.constant dense<0.000000e+00> : vector<64x8xf32>
    %4 = tpu.matmul %2, %3, %cst {dimension_numbers = #tpu.dot_dimension_numbers<[1], [0], [0], [1], [0, 0, 1, 1], [], []>} : vector<64x16xf32>, vector<16x8xf32>, vector<64x8xf32> -> vector<64x8xf32>
    %c0_4 = arith.constant 0 : index
    %c0_5 = arith.constant 0 : index
    %5 = vector.load %arg3[%c0_4, %c0_5] : memref<64x8xf32, #tpu.memory_space<vmem>>, vector<64x8xf32>
    tpu.vector_store %arg3[%c0_4, %c0_5], %4 {strides = array<i32>} : memref<64x8xf32, #tpu.memory_space<vmem>>, vector<64x8xf32>,
    return
  }
  func.func @transform_0(%arg0: i32) -> (i32, i32) {
    %c0_i32 = arith.constant 0 : i32
    %c0_i32_0 = arith.constant 0 : i32
    return %arg0, %c0_i32 : i32, i32
  }
  func.func @transform_1(%arg0: i32) -> (i32, i32) {
    %c0_i32 = arith.constant 0 : i32
    %c0_i32_0 = arith.constant 0 : i32
    %c0_i32_1 = arith.constant 0 : i32
    return %c0_i32, %c0_i32_0 : i32, i32
  }
  func.func @transform_2(%arg0: i32) -> (i32, i32) {
    %c0_i32 = arith.constant 0 : i32
    %c0_i32_0 = arith.constant 0 : i32
    return %arg0, %c0_i32 : i32, i32
  }
}

</mosaic_0001>

<llo_original>
// kernel: tpu_custom_call.1
$region0: #{tpu_custom_call.1}
  #allocation0 [shape = 'u32[]', space=smem, size = 0x4, offset = 0x4, fixed_abs, tag = 'smem constant byte address 0x4 - core index']
  #allocation1 [shape = 'u32[144,128]{1,0:T(1,128)}', space=vmem, size = 0x12000, scoped, tag = 'internal scratch']
  %s0 = inlined_call_operand.vmem [shape: f32[128,16], index: 0, kind: input, shape index: {}]
  %s1 = inlined_call_operand.vmem [shape: f32[16,8], index: 1, kind: input, shape index: {}]
  %s2 = inlined_call_operand.vmem [shape: f32[64,8], index: 2, kind: output, shape index: {}]
  %s3 = sld [smem:[#allocation0]]
  $region18: #{tpu_custom_call.1} parent=0
    _
  %s5 = ssub.s32 1, %s3
  %s6 = scalar_select 0, %s5, %s3
  // Predicated region
  $region2: #{tpu_custom_call.1} parent=0 // pred_check
    _
  $region3: #{tpu_custom_call.1} parent=0 // pred_check_branch
    %8 = sbr.rel (0) target = $region5
  $region4: #{tpu_custom_call.1} parent=0 // pred_region
    _
  $region5: #{tpu_custom_call.1} parent=0 // pred_fallthru
    _
  // Predicated region
  $region6: #{tpu_custom_call.1} parent=0 // pred_check
    _
  $region7: #{tpu_custom_call.1} parent=0 // pred_check_branch
    %10 = sbr.rel (0) target = $region9
  $region8: #{tpu_custom_call.1} parent=0 // pred_region
    _
  $region9: #{tpu_custom_call.1} parent=0 // pred_fallthru
    _
  %v11 = vld [vmem:[%s0] ss:$2 sm:$0xff]
  %s12 = scalar_lea.vmem %s0, 16
  %v13 = vld [vmem:[%s12] ss:$2 sm:$0xff]
  %s14 = scalar_lea.vmem %s0, 32
  %v15 = vld [vmem:[%s14] ss:$2 sm:$0xff]
  %s16 = scalar_lea.vmem %s0, 48
  %v17 = vld [vmem:[%s16] ss:$2 sm:$0xff]
  %s18 = scalar_lea.vmem %s0, 64
  %v19 = vld [vmem:[%s18] ss:$2 sm:$0xff]
  %s20 = scalar_lea.vmem %s0, 80
  %v21 = vld [vmem:[%s20] ss:$2 sm:$0xff]
  %s22 = scalar_lea.vmem %s0, 96
  %v23 = vld [vmem:[%s22] ss:$2 sm:$0xff]
  %s24 = scalar_lea.vmem %s0, 112
  %v25 = vld [vmem:[%s24] ss:$2 sm:$0xff]
  %s26 = scalar_lea.vmem %s0, 1
  %v27 = vld [vmem:[%s26] ss:$2 sm:$0xff]
  %s28 = scalar_lea.vmem %s0, 17
  %v29 = vld [vmem:[%s28] ss:$2 sm:$0xff]
  %s30 = scalar_lea.vmem %s0, 33
  %v31 = vld [vmem:[%s30] ss:$2 sm:$0xff]
  %s32 = scalar_lea.vmem %s0, 49
  %v33 = vld [vmem:[%s32] ss:$2 sm:$0xff]
  %s34 = scalar_lea.vmem %s0, 65
  %v35 = vld [vmem:[%s34] ss:$2 sm:$0xff]
  %s36 = scalar_lea.vmem %s0, 81
  %v37 = vld [vmem:[%s36] ss:$2 sm:$0xff]
  %s38 = scalar_lea.vmem %s0, 97
  %v39 = vld [vmem:[%s38] ss:$2 sm:$0xff]
  %s40 = scalar_lea.vmem %s0, 113
  %v41 = vld [vmem:[%s40] ss:$2 sm:$0xff]
  %v42 = vadd.f32 %v11, %v27
  %v43 = vadd.f32 %v13, %v29
  %v44 = vadd.f32 %v15, %v31
  %v45 = vadd.f32 %v17, %v33
  %v46 = vadd.f32 %v19, %v35
  %v47 = vadd.f32 %v21, %v37
  %v48 = vadd.f32 %v23, %v39
  %v49 = vadd.f32 %v25, %v41
  %v50 = vld [vmem:[%s1] sm:$0xff]
  %v51 = vld [vmem:[%s1 + $0x8] sm:$0xff]
  %vm52 = vcmask 130048
  %v54 = vsel %vm52, %v42, 0
  %v57 = vsel %vm52, %v43, 0
  %v60 = vsel %vm52, %v44, 0
  %v63 = vsel %vm52, %v45, 0
  %v66 = vsel %vm52, %v46, 0
  %v69 = vsel %vm52, %v47, 0
  %v72 = vsel %vm52, %v48, 0
  %v75 = vsel %vm52, %v49, 0
  %77 = vmatprep.subr.mxu0 0.0
  %78 = vmatpush1.msra.mxu0 0.0
  %79 = vmatprep.subr.mxu0 0.0
  %80 = vmatpush1.msra.mxu0 0.0
  %81 = vmatprep.subr.mxu0 0.0
  %82 = vmatpush1.msra.mxu0 0.0
  %83 = vmatprep.subr.mxu0 0.0
  %84 = vmatpush1.msra.mxu0 0.0
  %85 = vmatprep.subr.mxu0 0.0
  %86 = vmatpush1.msra.mxu0 0.0
  %87 = vmatprep.subr.mxu0 0.0
  %88 = vmatpush1.msra.mxu0 0.0
  %89 = vmatprep.subr.mxu0 0.0
  %90 = vmatpush1.msra.mxu0 0.0
  %91 = vmatprep.subr.mxu0 0.0
  %92 = vmatpush1.msra.mxu0 0.0
  %93 = vmatprep.subr.mxu0 0.0
  %94 = vmatpush1.msra.mxu0 0.0
  %95 = vmatprep.subr.mxu0 0.0
  %96 = vmatpush1.msra.mxu0 0.0
  %97 = vmatprep.subr.mxu0 0.0
  %98 = vmatpush1.msra.mxu0 0.0
  %99 = vmatprep.subr.mxu0 0.0
  %100 = vmatpush1.msra.mxu0 0.0
  %101 = vmatprep.subr.mxu0 0.0
  %102 = vmatpush1.msra.mxu0 0.0
  %103 = vmatprep.subr.mxu0 0.0
  %104 = vmatpush1.msra.mxu0 0.0
  %105 = vmatprep.subr.mxu0 0.0
  %106 = vmatpush1.msra.mxu0 %v51
  %107 = vmatprep.subr.mxu0 0.0
  %108 = vmatpush1.msra.mxu0 %v50
  %109 = vmatprep.subr.mxu0 0.0
  %110 = vmatpush2.msra.mxu0 0.0
  %111 = vmatprep.subr.mxu0 0.0
  %112 = vmatpush2.msra.mxu0 0.0
  %113 = vmatprep.subr.mxu0 0.0
  %114 = vmatpush2.msra.mxu0 0.0
  %115 = vmatprep.subr.mxu0 0.0
  %116 = vmatpush2.msra.mxu0 0.0
  %117 = vmatprep.subr.mxu0 0.0
  %118 = vmatpush2.msra.mxu0 0.0
  %119 = vmatprep.subr.mxu0 0.0
  %120 = vmatpush2.msra.mxu0 0.0
  %121 = vmatprep.subr.mxu0 0.0
  %122 = vmatpush2.msra.mxu0 0.0
  %123 = vmatprep.subr.mxu0 0.0
  %124 = vmatpush2.msra.mxu0 0.0
  %125 = vmatprep.subr.mxu0 0.0
  %126 = vmatpush2.msra.mxu0 0.0
  %127 = vmatprep.subr.mxu0 0.0
  %128 = vmatpush2.msra.mxu0 0.0
  %129 = vmatprep.subr.mxu0 0.0
  %130 = vmatpush2.msra.mxu0 0.0
  %131 = vmatprep.subr.mxu0 0.0
  %132 = vmatpush2.msra.mxu0 0.0
  %133 = vmatprep.subr.mxu0 0.0
  %134 = vmatpush2.msra.mxu0 0.0
  %135 = vmatprep.subr.mxu0 0.0
  %136 = vmatpush2.msra.mxu0 0.0
  %137 = vmatprep.subr.mxu0 0.0
  %138 = vmatpush2.msra.mxu0 0.0
  %139 = vmatprep.subr.mxu0 0.0
  %140 = vmatpush2.msra.mxu0 0.0
  %141 = vmatprep.mubr.f32.mxu0 0.0
  %142 = vmatmul.mubr.f32.gmra.mxu0 %v54
  %v143 = vpop.f32.mrf.mxu0
  %v144 = vadd.f32 0.0, %v143
  %v145 = vpop.f32.mrf.mxu0
  %146 = vmatprep.mubr.f32.mxu0 0.0
  %147 = vmatmul.mubr.f32.gmra.mxu0 %v57
  %v148 = vpop.f32.mrf.mxu0
  %v149 = vadd.f32 0.0, %v148
  %v150 = vpop.f32.mrf.mxu0
  %151 = vmatprep.mubr.f32.mxu0 0.0
  %152 = vmatmul.mubr.f32.gmra.mxu0 %v60
  %v153 = vpop.f32.mrf.mxu0
  %v154 = vadd.f32 0.0, %v153
  %v155 = vpop.f32.mrf.mxu0
  %156 = vmatprep.mubr.f32.mxu0 0.0
  %157 = vmatmul.mubr.f32.gmra.mxu0 %v63
  %v158 = vpop.f32.mrf.mxu0
  %v159 = vadd.f32 0.0, %v158
  %v160 = vpop.f32.mrf.mxu0
  %161 = vmatprep.mubr.f32.mxu0 0.0
  %162 = vmatmul.mubr.f32.gmra.mxu0 %v66
  %v163 = vpop.f32.mrf.mxu0
  %v164 = vadd.f32 0.0, %v163
  %v165 = vpop.f32.mrf.mxu0
  %166 = vmatprep.mubr.f32.mxu0 0.0
  %167 = vmatmul.mubr.f32.gmra.mxu0 %v69
  %v168 = vpop.f32.mrf.mxu0
  %v169 = vadd.f32 0.0, %v168
  %v170 = vpop.f32.mrf.mxu0
  %171 = vmatprep.mubr.f32.mxu0 0.0
  %172 = vmatmul.mubr.f32.gmra.mxu0 %v72
  %v173 = vpop.f32.mrf.mxu0
  %v174 = vadd.f32 0.0, %v173
  %v175 = vpop.f32.mrf.mxu0
  %176 = vmatprep.mubr.f32.mxu0 0.0
  %177 = vmatmul.mubr.f32.gmra.mxu0 %v75
  %v178 = vpop.f32.mrf.mxu0
  %v179 = vadd.f32 0.0, %v178
  %v180 = vpop.f32.mrf.mxu0
  %181 = vdwg.mxu0
  %vm182 = vcmask 64512
  %183 = vst.msk [vmem:[%s2] sm:$0xff] %vm182, %v144
  %184 = vst.msk [vmem:[%s2 + $0x8] sm:$0xff] %vm182, %v149
  %185 = vst.msk [vmem:[%s2 + $0x10] sm:$0xff] %vm182, %v154
  %186 = vst.msk [vmem:[%s2 + $0x18] sm:$0xff] %vm182, %v159
  %187 = vst.msk [vmem:[%s2 + $0x20] sm:$0xff] %vm182, %v164
  %188 = vst.msk [vmem:[%s2 + $0x28] sm:$0xff] %vm182, %v169
  %189 = vst.msk [vmem:[%s2 + $0x30] sm:$0xff] %vm182, %v174
  %190 = vst.msk [vmem:[%s2 + $0x38] sm:$0xff] %vm182, %v179
  // Predicated region
  $region10: #{tpu_custom_call.1} parent=0 // pred_check
    _
  $region11: #{tpu_custom_call.1} parent=0 // pred_check_branch
    %192 = sbr.rel (0) target = $region13
  $region12: #{tpu_custom_call.1} parent=0 // pred_region
    _
  $region13: #{tpu_custom_call.1} parent=0 // pred_fallthru
    _
  // Predicated region
  $region14: #{tpu_custom_call.1} parent=0 // pred_check
    _
  $region15: #{tpu_custom_call.1} parent=0 // pred_check_branch
    %194 = sbr.rel (0) target = $region17
  $region16: #{tpu_custom_call.1} parent=0 // pred_region
    _
  $region17: #{tpu_custom_call.1} parent=0 // pred_fallthru
    _

</llo_original>
